<compile_context>
chip_gen: v5e
topology: v5e:2x2
jax: 0.10.0
libtpu: 0.0.40
codegen_flags: <defaults>
</compile_context>

<pallas_src>
import functools

import jax
import jax.numpy as jnp
from jax.experimental import pallas as pl
from jax.experimental.pallas import tpu as pltpu


def _rgu_kernel(x_ref, wk_ref, bk_ref, wv_ref, bv_ref, wy_ref, by_ref, o_ref,
                *, hw_true):
    # One block of Nb fused samples in (R, HWp) layout, R = Nb*C rows on
    # sublanes, (padded) spatial positions on lanes.
    x = x_ref[...]                      # native dtype (f32 or bf16), no upcast
    hw_pad = x.shape[1]                 # static

    # 1x1 convolutions == block-diagonal (R, R) @ (R, HWp) channel matmuls with
    # f32 accumulation (bias columns broadcast along lanes).
    k = jnp.dot(wk_ref[...], x, preferred_element_type=jnp.float32) + bk_ref[...]
    v = jnp.dot(wv_ref[...], x, preferred_element_type=jnp.float32) + bv_ref[...]
    t = k * v                           # gated product (f32)

    # Lane mask excluding zero-padded spatial columns from the statistics
    # (padded columns of t are bk*bv, not zero, because of the biases).
    if hw_pad != hw_true:
        lane = jax.lax.broadcasted_iota(jnp.int32, t.shape, 1)
        valid = lane < hw_true
        t_stat = jnp.where(valid, t, 0.0)
    else:
        valid = None
        t_stat = t

    # Instance standardization over the spatial (lane) axis.  Centered variance
    # (numerically robust) with unbiased (HW-1) denominator, matching torch.std.
    s1 = jnp.sum(t_stat, axis=1, keepdims=True)            # (R, 1)
    mean = s1 * (1.0 / hw_true)
    d = t - mean                                            # reused below
    d_stat = jnp.where(valid, d, 0.0) if valid is not None else d
    var = jnp.sum(d_stat * d_stat, axis=1, keepdims=True) * (1.0 / (hw_true - 1))
    # Single tiny (R,1) reciprocal, broadcast-multiplied (no full-tensor divide).
    inv_std = 1.0 / (jnp.sqrt(var) + 1e-5)
    s = d * inv_std

    # Exact GELU (matches torch.nn.functional.gelu default).
    # (Tanh-approx GELU would move work to the EUP slot on v6e/v7x, but changes
    #  numerics vs the PyTorch reference, so we keep exact erf.)
    q = 0.5 * s * (1.0 + jax.lax.erf(s * 0.7071067811865476))

    # Final 1x1 conv; feed q back in the weight dtype so bf16 inputs keep the
    # MXU at native rate (no-op for f32 inputs).
    y = jnp.dot(wy_ref[...], q.astype(wy_ref.dtype),
                preferred_element_type=jnp.float32) + by_ref[...]
    o_ref[...] = y.astype(o_ref.dtype)


def _vmem_budget_bytes():
    """Per-chip scoped-VMEM budget with headroom for Mosaic internal scratch."""
    try:
        cap = int(pltpu.get_tpu_info().vmem_capacity_bytes)
    except Exception:
        cap = 64 << 20          # conservative fallback (v7x per-TensorCore size)
    return int(cap * 0.85)      # ~54 MiB on v7x, ~109 MiB on v5e/v6e


def recursive_gated_unit(x_nchw, wk, bk, wv, bv, wy, by):
    """x_nchw: (N, C, H, W). Conv weights: (Cout, Cin), biases: (Cout,)."""
    N, C, H, W = x_nchw.shape
    HW = H * W
    if HW < 2:
        raise ValueError("unbiased instance std requires H*W >= 2")

    dt = x_nchw.dtype
    itemsize = jnp.dtype(dt).itemsize

    # Lane-dense spatial axis: pad HW up to a multiple of 128.
    HWp = max(128, ((HW + 127) // 128) * 128)

    # Batch Nb samples per grid step so Nb*C fills the vreg sublanes
    # (8 for 32-bit, 16 for 16-bit dtypes).
    sub_min = 16 if itemsize == 2 else 8
    Nb = min(max(1, -(-sub_min // C)), N)

    vmem_budget = _vmem_budget_bytes()

    def step_vmem(nb):
        r = nb * C
        # x + out blocks double-buffered (input dtype) + ~6 live f32
        # intermediates (k, v, t/d, s, q, temps) + small weights/biases.
        return (4 * r * HWp * itemsize + 6 * r * HWp * 4
                + 2 * (3 * r * r * itemsize + 3 * r * 4) + (1 << 16))

    while Nb > 1 and step_vmem(Nb) > vmem_budget:
        Nb -= 1
    # TODO(synk): if step_vmem(1) > vmem_budget (huge H*W), switch to the HW-tiled
    # two-pass path described at the top of the file instead of relying on the
    # compiler to squeeze a whole sample into VMEM.

    R = Nb * C
    G = -(-N // Nb)             # grid steps
    Np = G * Nb                 # batch padded to a multiple of Nb

    # NCHW -> (N, C, HW) is a free reshape (HW lands on the lane axis); pad the
    # spatial axis to HWp and (rarely) the batch axis to Np, then fuse Nb
    # samples per block: (G, Nb*C, HWp).
    x = x_nchw.reshape(N, C, HW)
    if HWp != HW:
        x = jnp.pad(x, ((0, 0), (0, 0), (0, HWp - HW)))
    if Np != N:
        x = jnp.pad(x, ((0, Np - N), (0, 0), (0, 0)))
    x = x.reshape(G, R, HWp)

    # Block-diagonal weights (kron(I_Nb, W)) and tiled biases so the fused block
    # is handled by a single 2-D matmul per conv.  Weights stay in the input
    # dtype; biases are (R, 1) f32 columns that broadcast along lanes.
    def prep_w(w):
        w = w.astype(dt)
        if Nb > 1:
            w = jnp.kron(jnp.eye(Nb, dtype=dt), w)
        return w

    def prep_b(b):
        b = b.astype(jnp.float32)
        if Nb > 1:
            b = jnp.tile(b, Nb)
        return b.reshape(R, 1)

    wk_, wv_, wy_ = prep_w(wk), prep_w(wv), prep_w(wy)
    bk_, bv_, by_ = prep_b(bk), prep_b(bv), prep_b(by)

    vmem_needed = step_vmem(Nb)
    vmem_limit = int(min(max(vmem_needed, 16 << 20), vmem_budget))

    cost = pl.CostEstimate(
        flops=G * 3 * 2 * R * R * HWp,
        transcendentals=G * R * HWp,
        bytes_accessed=2 * G * R * HWp * itemsize
        + 2 * (3 * R * R * itemsize + 3 * R * 4),
    )

    full2 = lambda i: (0, 0)
    out = pl.pallas_call(
        functools.partial(_rgu_kernel, hw_true=HW),
        out_shape=jax.ShapeDtypeStruct((G, R, HWp), dt),
        grid=(G,),
        in_specs=[
            pl.BlockSpec((None, R, HWp), lambda i: (i, 0, 0)),  # fused sample block
            pl.BlockSpec((R, R), full2),   # wk (block-diag)
            pl.BlockSpec((R, 1), full2),   # bk
            pl.BlockSpec((R, R), full2),   # wv
            pl.BlockSpec((R, 1), full2),   # bv
            pl.BlockSpec((R, R), full2),   # wy
            pl.BlockSpec((R, 1), full2),   # by
        ],
        out_specs=pl.BlockSpec((None, R, HWp), lambda i: (i, 0, 0)),
        compiler_params=pltpu.CompilerParams(
            dimension_semantics=("parallel",),
            vmem_limit_bytes=vmem_limit,
        ),
        cost_estimate=cost,
    )(x, wk_, bk_, wv_, bv_, wy_, by_)

    # (G, R, HWp) -> (Np, C, HWp) is free; drop pad samples / pad columns.
    out = out.reshape(Np, C, HWp)
    if Np != N:
        out = out[:N]
    if HWp != HW:
        out = out[:, :, :HW]
    return out.reshape(N, C, H, W)


def _reference(x_nchw, wk, bk, wv, bv, wy, by):
    """Pure-JAX reference mirroring the PyTorch forward."""
    def conv1x1(x, w, b):
        y = jnp.einsum("nchw,oc->nohw", x, w)
        return y + b[None, :, None, None]

    k = conv1x1(x_nchw, wk, bk)
    v = conv1x1(x_nchw, wv, bv)
    t = k * v
    mean = jnp.mean(t, axis=(2, 3), keepdims=True)
    n = t.shape[2] * t.shape[3]
    var = jnp.sum((t - mean) ** 2, axis=(2, 3), keepdims=True) / (n - 1)
    std = jnp.sqrt(var)
    s = (t - mean) / (std + 1e-5)
    q = 0.5 * s * (1.0 + jax.lax.erf(s / jnp.sqrt(2.0)))
    return conv1x1(q, wy, by)


if __name__ == "__main__":
    key = jax.random.PRNGKey(0)
    N, C, H, W = 2, 4, 16, 16

    keys = jax.random.split(key, 7)
    x = jax.random.normal(keys[0], (N, C, H, W), dtype=jnp.float32)
    scale = 1.0 / jnp.sqrt(C)
    wk = jax.random.uniform(keys[1], (C, C), jnp.float32, -scale, scale)
    bk = jax.random.uniform(keys[2], (C,), jnp.float32, -scale, scale)
    wv = jax.random.uniform(keys[3], (C, C), jnp.float32, -scale, scale)
    bv = jax.random.uniform(keys[4], (C,), jnp.float32, -scale, scale)
    wy = jax.random.uniform(keys[5], (C, C), jnp.float32, -scale, scale)
    by = jax.random.uniform(keys[6], (C,), jnp.float32, -scale, scale)

    y = recursive_gated_unit(x, wk, bk, wv, bv, wy, by)
    y = jax.block_until_ready(y)

    y_ref = jax.block_until_ready(_reference(x, wk, bk, wv, bv, wy, by))
    assert y.shape == (N, C, H, W)
    assert jnp.allclose(y, y_ref, atol=1e-4, rtol=1e-4), "mismatch vs reference"

    print("KERNEL_OK")
</pallas_src>

<mosaic_0001>
module attributes {stable_mosaic.version = 11 : i64} {
  func.func @_rgu_kernel(%arg0: i32, %arg1: memref<1x8x256xf32, #tpu.memory_space<vmem>>, %arg2: memref<8x8xf32, #tpu.memory_space<vmem>>, %arg3: memref<8x1xf32, #tpu.memory_space<vmem>>, %arg4: memref<8x8xf32, #tpu.memory_space<vmem>>, %arg5: memref<8x1xf32, #tpu.memory_space<vmem>>, %arg6: memref<8x8xf32, #tpu.memory_space<vmem>>, %arg7: memref<8x1xf32, #tpu.memory_space<vmem>>, %arg8: memref<1x8x256xf32, #tpu.memory_space<vmem>>) attributes {dimension_semantics = [#tpu.dimension_semantics<parallel>], iteration_bounds = array<i64: 1>, scalar_prefetch = 0 : i64, scratch_operands = 0 : i64, tpu.core_type = #tpu.core_type<tc>, window_params = [{transform_indices = @transform_0, window_bounds = array<i64: 1, 8, 256>}, {pipeline_mode = #tpu.pipeline_mode<synchronous>, transform_indices = @transform_1, window_bounds = array<i64: 8, 8>}, {pipeline_mode = #tpu.pipeline_mode<synchronous>, transform_indices = @transform_2, window_bounds = array<i64: 8, 1>}, {pipeline_mode = #tpu.pipeline_mode<synchronous>, transform_indices = @transform_3, window_bounds = array<i64: 8, 8>}, {pipeline_mode = #tpu.pipeline_mode<synchronous>, transform_indices = @transform_4, window_bounds = array<i64: 8, 1>}, {pipeline_mode = #tpu.pipeline_mode<synchronous>, transform_indices = @transform_5, window_bounds = array<i64: 8, 8>}, {pipeline_mode = #tpu.pipeline_mode<synchronous>, transform_indices = @transform_6, window_bounds = array<i64: 8, 1>}, {transform_indices = @transform_7, window_bounds = array<i64: 1, 8, 256>}]} {
    %c0 = arith.constant 0 : index
    %c0_0 = arith.constant 0 : index
    %c0_1 = arith.constant 0 : index
    %0 = vector.load %arg1[%c0, %c0_0, %c0_1] : memref<1x8x256xf32, #tpu.memory_space<vmem>>, vector<1x8x256xf32>
    %1 = vector.shape_cast %0 : vector<1x8x256xf32> to vector<8x256xf32>
    %c0_2 = arith.constant 0 : index
    %c0_3 = arith.constant 0 : index
    %2 = vector.load %arg2[%c0_2, %c0_3] : memref<8x8xf32, #tpu.memory_space<vmem>>, vector<8x8xf32>
    %cst = arith.constant dense<0.000000e+00> : vector<8x256xf32>
    %3 = tpu.matmul %2, %1, %cst {dimension_numbers = #tpu.dot_dimension_numbers<[1], [0], [0], [1], [0, 0, 1, 1], [], []>} : vector<8x8xf32>, vector<8x256xf32>, vector<8x256xf32> -> vector<8x256xf32>
    %c0_4 = arith.constant 0 : index
    %c0_5 = arith.constant 0 : index
    %4 = vector.load %arg3[%c0_4, %c0_5] : memref<8x1xf32, #tpu.memory_space<vmem>>, vector<8x1xf32>
    %5 = vector.broadcast %4 : vector<8x1xf32> to vector<8x256xf32>
    %6 = arith.addf %3, %5 : vector<8x256xf32>
    %c0_6 = arith.constant 0 : index
    %c0_7 = arith.constant 0 : index
    %7 = vector.load %arg4[%c0_6, %c0_7] : memref<8x8xf32, #tpu.memory_space<vmem>>, vector<8x8xf32>
    %cst_8 = arith.constant dense<0.000000e+00> : vector<8x256xf32>
    %8 = tpu.matmul %7, %1, %cst_8 {dimension_numbers = #tpu.dot_dimension_numbers<[1], [0], [0], [1], [0, 0, 1, 1], [], []>} : vector<8x8xf32>, vector<8x256xf32>, vector<8x256xf32> -> vector<8x256xf32>
    %c0_9 = arith.constant 0 : index
    %c0_10 = arith.constant 0 : index
    %9 = vector.load %arg5[%c0_9, %c0_10] : memref<8x1xf32, #tpu.memory_space<vmem>>, vector<8x1xf32>
    %10 = vector.broadcast %9 : vector<8x1xf32> to vector<8x256xf32>
    %11 = arith.addf %8, %10 : vector<8x256xf32>
    %12 = arith.mulf %6, %11 : vector<8x256xf32>
    %cst_11 = arith.constant dense<0.000000e+00> : vector<8xf32>
    %13 = vector.multi_reduction <add>, %12, %cst_11 [1] : vector<8x256xf32> to vector<8xf32>
    %14 = vector.shape_cast %13 : vector<8xf32> to vector<8x1xf32>
    %cst_12 = arith.constant 3.906250e-03 : f32
    %15 = vector.broadcast %cst_12 : f32 to vector<8x1xf32>
    %16 = arith.mulf %14, %15 : vector<8x1xf32>
    %17 = vector.broadcast %16 : vector<8x1xf32> to vector<8x256xf32>
    %18 = arith.subf %12, %17 : vector<8x256xf32>
    %19 = arith.mulf %18, %18 : vector<8x256xf32>
    %cst_13 = arith.constant dense<0.000000e+00> : vector<8xf32>
    %20 = vector.multi_reduction <add>, %19, %cst_13 [1] : vector<8x256xf32> to vector<8xf32>
    %21 = vector.shape_cast %20 : vector<8xf32> to vector<8x1xf32>
    %cst_14 = arith.constant 0.00392156886 : f32
    %22 = vector.broadcast %cst_14 : f32 to vector<8x1xf32>
    %23 = arith.mulf %21, %22 : vector<8x1xf32>
    %24 = math.sqrt %23 : vector<8x1xf32>
    %cst_15 = arith.constant 9.99999974E-6 : f32
    %25 = vector.broadcast %cst_15 : f32 to vector<8x1xf32>
    %26 = arith.addf %24, %25 : vector<8x1xf32>
    %cst_16 = arith.constant 1.000000e+00 : f32
    %27 = vector.broadcast %cst_16 : f32 to vector<8x1xf32>
    %28 = arith.divf %27, %26 : vector<8x1xf32>
    %29 = vector.broadcast %28 : vector<8x1xf32> to vector<8x256xf32>
    %30 = arith.mulf %18, %29 : vector<8x256xf32>
    %cst_17 = arith.constant 5.000000e-01 : f32
    %31 = vector.broadcast %cst_17 : f32 to vector<8x256xf32>
    %32 = arith.mulf %31, %30 : vector<8x256xf32>
    %cst_18 = arith.constant 0.707106769 : f32
    %33 = vector.broadcast %cst_18 : f32 to vector<8x256xf32>
    %34 = arith.mulf %30, %33 : vector<8x256xf32>
    %35 = math.erf %34 : vector<8x256xf32>
    %cst_19 = arith.constant 1.000000e+00 : f32
    %36 = vector.broadcast %cst_19 : f32 to vector<8x256xf32>
    %37 = arith.addf %36, %35 : vector<8x256xf32>
    %38 = arith.mulf %32, %37 : vector<8x256xf32>
    %c0_20 = arith.constant 0 : index
    %c0_21 = arith.constant 0 : index
    %39 = vector.load %arg6[%c0_20, %c0_21] : memref<8x8xf32, #tpu.memory_space<vmem>>, vector<8x8xf32>
    %cst_22 = arith.constant dense<0.000000e+00> : vector<8x256xf32>
    %40 = tpu.matmul %39, %38, %cst_22 {dimension_numbers = #tpu.dot_dimension_numbers<[1], [0], [0], [1], [0, 0, 1, 1], [], []>} : vector<8x8xf32>, vector<8x256xf32>, vector<8x256xf32> -> vector<8x256xf32>
    %c0_23 = arith.constant 0 : index
    %c0_24 = arith.constant 0 : index
    %41 = vector.load %arg7[%c0_23, %c0_24] : memref<8x1xf32, #tpu.memory_space<vmem>>, vector<8x1xf32>
    %42 = vector.broadcast %41 : vector<8x1xf32> to vector<8x256xf32>
    %43 = arith.addf %40, %42 : vector<8x256xf32>
    %c0_25 = arith.constant 0 : index
    %c0_26 = arith.constant 0 : index
    %c0_27 = arith.constant 0 : index
    %44 = vector.load %arg8[%c0_25, %c0_26, %c0_27] : memref<1x8x256xf32, #tpu.memory_space<vmem>>, vector<1x8x256xf32>
    %45 = vector.shape_cast %44 : vector<1x8x256xf32> to vector<8x256xf32>
    %46 = vector.shape_cast %43 : vector<8x256xf32> to vector<1x8x256xf32>
    tpu.vector_store %arg8[%c0_25, %c0_26, %c0_27], %46 {strides = array<i32>} : memref<1x8x256xf32, #tpu.memory_space<vmem>>, vector<1x8x256xf32>,
    return
  }
  func.func @transform_0(%arg0: i32) -> (i32, i32, i32) {
    %c0_i32 = arith.constant 0 : i32
    %c0_i32_0 = arith.constant 0 : i32
    %c0_i32_1 = arith.constant 0 : i32
    return %arg0, %c0_i32, %c0_i32_0 : i32, i32, i32
  }
  func.func @transform_1(%arg0: i32) -> (i32, i32) {
    %c0_i32 = arith.constant 0 : i32
    %c0_i32_0 = arith.constant 0 : i32
    %c0_i32_1 = arith.constant 0 : i32
    return %c0_i32, %c0_i32_0 : i32, i32
  }
  func.func @transform_2(%arg0: i32) -> (i32, i32) {
    %c0_i32 = arith.constant 0 : i32
    %c0_i32_0 = arith.constant 0 : i32
    %c0_i32_1 = arith.constant 0 : i32
    return %c0_i32, %c0_i32_0 : i32, i32
  }
  func.func @transform_3(%arg0: i32) -> (i32, i32) {
    %c0_i32 = arith.constant 0 : i32
    %c0_i32_0 = arith.constant 0 : i32
    %c0_i32_1 = arith.constant 0 : i32
    return %c0_i32, %c0_i32_0 : i32, i32
  }
  func.func @transform_4(%arg0: i32) -> (i32, i32) {
    %c0_i32 = arith.constant 0 : i32
    %c0_i32_0 = arith.constant 0 : i32
    %c0_i32_1 = arith.constant 0 : i32
    return %c0_i32, %c0_i32_0 : i32, i32
  }
  func.func @transform_5(%arg0: i32) -> (i32, i32) {
    %c0_i32 = arith.constant 0 : i32
    %c0_i32_0 = arith.constant 0 : i32
    %c0_i32_1 = arith.constant 0 : i32
    return %c0_i32, %c0_i32_0 : i32, i32
  }
  func.func @transform_6(%arg0: i32) -> (i32, i32) {
    %c0_i32 = arith.constant 0 : i32
    %c0_i32_0 = arith.constant 0 : i32
    %c0_i32_1 = arith.constant 0 : i32
    return %c0_i32, %c0_i32_0 : i32, i32
  }
  func.func @transform_7(%arg0: i32) -> (i32, i32, i32) {
    %c0_i32 = arith.constant 0 : i32
    %c0_i32_0 = arith.constant 0 : i32
    %c0_i32_1 = arith.constant 0 : i32
    return %arg0, %c0_i32, %c0_i32_0 : i32, i32, i32
  }
}

</mosaic_0001>

<llo_original>
// kernel: tpu_custom_call.1
$region0: #{tpu_custom_call.1}
  #allocation0 [shape = 'u32[]', space=smem, size = 0x4, offset = 0x4, fixed_abs, tag = 'smem constant byte address 0x4 - core index']
  #allocation1 [shape = 'u32[72,128]{1,0:T(1,128)}', space=vmem, size = 0x9000, scoped, tag = 'internal scratch']
  %s0 = inlined_call_operand.vmem [shape: f32[1,8,256], index: 0, kind: input, shape index: {}]
  %s1 = inlined_call_operand.vmem [shape: f32[8,8], index: 1, kind: input, shape index: {}]
  %s2 = inlined_call_operand.vmem [shape: f32[8,1], index: 2, kind: input, shape index: {}]
  %s3 = inlined_call_operand.hbm [shape: f32[8,8], index: 3, kind: input, shape index: {}]
  %s4 = inlined_call_operand.vmem [shape: f32[8,1], index: 4, kind: input, shape index: {}]
  %s5 = inlined_call_operand.hbm [shape: f32[8,8], index: 5, kind: input, shape index: {}]
  %s6 = inlined_call_operand.vmem [shape: f32[8,1], index: 6, kind: input, shape index: {}]
  %s7 = inlined_call_operand.hbm [shape: f32[1,8,256], index: 7, kind: output, shape index: {}]
  %s8 = sld [smem:[#allocation0]]
  $region46: #{tpu_custom_call.1} parent=0
    _
  %s10 = ssub.s32 1, %s8
  %s11 = scalar_select 0, %s10, %s8
  $region1: #{tpu_custom_call.1} parent=0
    #allocation2 [shape = 'u8[4096]{0}', space=vmem, size = 0x1000, scoped, tag = 'input window, operand 3, single buffered']
    #allocation3 [shape = 's32[1]{0}', space=sflag, size = 0x4, scoped, tag = 'scoped memory for tpu_custom_call.1']
    #allocation4 [shape = 's32[1]{0}', space=sflag, size = 0x4, scoped, tag = 'scoped memory for tpu_custom_call.1']
    #allocation5 [shape = 'u8[4096]{0}', space=vmem, size = 0x1000, scoped, tag = 'input window, operand 5, single buffered']
    #allocation6 [shape = 's32[1]{0}', space=sflag, size = 0x4, scoped, tag = 'scoped memory for tpu_custom_call.1']
    #allocation7 [shape = 'u8[8192]{0}', space=vmem, size = 0x2000, scoped, tag = 'output window, operand 0, single buffered']
    %12 = vsyncpa [#allocation3], 0
    %13 = vsyncpa [#allocation6], 0
    %14 = vsyncpa [#allocation4], 0
    // Predicated region
    $region2: #{tpu_custom_call.1} parent=1 // pred_check
      _
    $region3: #{tpu_custom_call.1} parent=1 // pred_check_branch
      %16 = sbr.rel (0) target = $region5
    $region4: #{tpu_custom_call.1} parent=1 // pred_region
      _
    $region5: #{tpu_custom_call.1} parent=1 // pred_fallthru
      _
    // Predicated region
    $region6: #{tpu_custom_call.1} parent=1 // pred_check
      _
    $region7: #{tpu_custom_call.1} parent=1 // pred_check_branch
      %18 = sbr.rel (0) target = $region9
    $region8: #{tpu_custom_call.1} parent=1 // pred_region
      _
    $region9: #{tpu_custom_call.1} parent=1 // pred_fallthru
      _
    // Predicated region
    $region10: #{tpu_custom_call.1} parent=1 // pred_check
      _
    $region11: #{tpu_custom_call.1} parent=1 // pred_check_branch
      %20 = sbr.rel (0) target = $region13
    $region12: #{tpu_custom_call.1} parent=1 // pred_region
      _
    $region13: #{tpu_custom_call.1} parent=1 // pred_fallthru
      _
    // Predicated region
    $region14: #{tpu_custom_call.1} parent=1 // pred_check
      _
    $region15: #{tpu_custom_call.1} parent=1 // pred_check_branch
      %22 = sbr.rel (0) target = $region17
    $region16: #{tpu_custom_call.1} parent=1 // pred_region
      %24 = vsyncadd [#allocation3], 0
      %s26 = sshll.u32 %s3, 4
      %s27 = int_to_ptr.hbm [resolvable:$true] %s26
      %s28 = sshll.u32 [#allocation2], 4
      %s29 = int_to_ptr.vmem [resolvable:$true] %s28
      %31 = dma.hbm_to_vmem [thread:$0]  %s27, 128, %s29, [#allocation3]
    $region17: #{tpu_custom_call.1} parent=1 // pred_fallthru
      _
    // Predicated region
    $region18: #{tpu_custom_call.1} parent=1 // pred_check
      _
    $region19: #{tpu_custom_call.1} parent=1 // pred_check_branch
      %33 = sbr.rel (0) target = $region21
    $region20: #{tpu_custom_call.1} parent=1 // pred_region
      _
    $region21: #{tpu_custom_call.1} parent=1 // pred_fallthru
      _
    // Predicated region
    $region22: #{tpu_custom_call.1} parent=1 // pred_check
      _
    $region23: #{tpu_custom_call.1} parent=1 // pred_check_branch
      %35 = sbr.rel (0) target = $region25
    $region24: #{tpu_custom_call.1} parent=1 // pred_region
      %37 = vsyncadd [#allocation6], 0
      %s39 = sshll.u32 %s5, 4
      %s40 = int_to_ptr.hbm [resolvable:$true] %s39
      %s41 = sshll.u32 [#allocation5], 4
      %s42 = int_to_ptr.vmem [resolvable:$true] %s41
      %44 = dma.hbm_to_vmem [thread:$0]  %s40, 128, %s42, [#allocation6]
    $region25: #{tpu_custom_call.1} parent=1 // pred_fallthru
      _
    // Predicated region
    $region26: #{tpu_custom_call.1} parent=1 // pred_check
      _
    $region27: #{tpu_custom_call.1} parent=1 // pred_check_branch
      %46 = sbr.rel (0) target = $region29
    $region28: #{tpu_custom_call.1} parent=1 // pred_region
      _
    $region29: #{tpu_custom_call.1} parent=1 // pred_fallthru
      _
    // Predicated region
    $region30: #{tpu_custom_call.1} parent=1 // pred_check
      _
    $region31: #{tpu_custom_call.1} parent=1 // pred_check_branch
      %48 = sbr.rel (0) target = $region33
    $region32: #{tpu_custom_call.1} parent=1 // pred_region
      %50 = dma.done [#allocation3], 128
    $region33: #{tpu_custom_call.1} parent=1 // pred_fallthru
      _
    // Predicated region
    $region34: #{tpu_custom_call.1} parent=1 // pred_check
      _
    $region35: #{tpu_custom_call.1} parent=1 // pred_check_branch
      %52 = sbr.rel (0) target = $region37
    $region36: #{tpu_custom_call.1} parent=1 // pred_region
      %54 = dma.done [#allocation6], 128
    $region37: #{tpu_custom_call.1} parent=1 // pred_fallthru
      _
    %v55 = vld [vmem:[%s0] sm:$0xff]
    %v56 = vld [vmem:[%s0 + $0x8] sm:$0xff]
    %v57 = vld [vmem:[%s1] sm:$0xff]
    %v58 = vld [vmem:[%s2] sm:$0xff]
    %60 = vset.pattern.permute.xlu0 0
    %61 = vperm.xlu0 %60, %v58
    %v62 = vpop.permute.xlu0 %61
    %vm64 = vcmask 64512
    %v66 = vsel %vm64, %v57, 0
    %68 = vmatpush.msra.mxu0 0.0
    %69 = vmatpush.msra.mxu0 0.0
    %70 = vmatpush.msra.mxu0 0.0
    %71 = vmatpush.msra.mxu0 0.0
    %72 = vmatpush.msra.mxu0 0.0
    %73 = vmatpush.msra.mxu0 0.0
    %74 = vmatpush.msra.mxu0 0.0
    %75 = vmatpush.msra.mxu0 0.0
    %76 = vmatpush.msra.mxu0 0.0
    %77 = vmatpush.msra.mxu0 0.0
    %78 = vmatpush.msra.mxu0 0.0
    %79 = vmatpush.msra.mxu0 0.0
    %80 = vmatpush.msra.mxu0 0.0
    %81 = vmatpush.msra.mxu0 0.0
    %82 = vmatpush.msra.mxu0 0.0
    %83 = vmatpush.msra.mxu0 %v55
    %84 = vmatmul.f32.gmra.mxu0 %v66
    %v85 = vpop.f32.mrf.mxu0
    %v86 = vadd.f32 %v62, %v85
    %87 = vdwg.mxu0
    %88 = vmatpush.msra.mxu0 0.0
    %89 = vmatpush.msra.mxu0 0.0
    %90 = vmatpush.msra.mxu0 0.0
    %91 = vmatpush.msra.mxu0 0.0
    %92 = vmatpush.msra.mxu0 0.0
    %93 = vmatpush.msra.mxu0 0.0
    %94 = vmatpush.msra.mxu0 0.0
    %95 = vmatpush.msra.mxu0 0.0
    %96 = vmatpush.msra.mxu0 0.0
    %97 = vmatpush.msra.mxu0 0.0
    %98 = vmatpush.msra.mxu0 0.0
    %99 = vmatpush.msra.mxu0 0.0
    %100 = vmatpush.msra.mxu0 0.0
    %101 = vmatpush.msra.mxu0 0.0
    %102 = vmatpush.msra.mxu0 0.0
    %103 = vmatpush.msra.mxu0 %v56
    %104 = vmatmul.f32.gmra.mxu0 %v66
    %v105 = vpop.f32.mrf.mxu0
    %v106 = vadd.f32 %v62, %v105
    %107 = vdwg.mxu0
    %v108 = vld [vmem:[#allocation2] sm:$0xff]
    %v109 = vld [vmem:[%s4] sm:$0xff]
    %111 = vset.pattern.permute.xlu0 0
    %112 = vperm.xlu0 %111, %v109
    %v113 = vpop.permute.xlu0 %112
    %v116 = vsel %vm64, %v108, 0
    %118 = vmatpush.msra.mxu0 0.0
    %119 = vmatpush.msra.mxu0 0.0
    %120 = vmatpush.msra.mxu0 0.0
    %121 = vmatpush.msra.mxu0 0.0
    %122 = vmatpush.msra.mxu0 0.0
    %123 = vmatpush.msra.mxu0 0.0
    %124 = vmatpush.msra.mxu0 0.0
    %125 = vmatpush.msra.mxu0 0.0
    %126 = vmatpush.msra.mxu0 0.0
    %127 = vmatpush.msra.mxu0 0.0
    %128 = vmatpush.msra.mxu0 0.0
    %129 = vmatpush.msra.mxu0 0.0
    %130 = vmatpush.msra.mxu0 0.0
    %131 = vmatpush.msra.mxu0 0.0
    %132 = vmatpush.msra.mxu0 0.0
    %133 = vmatpush.msra.mxu0 %v55
    %134 = vmatmul.f32.gmra.mxu0 %v116
    %v135 = vpop.f32.mrf.mxu0
    %v136 = vadd.f32 %v113, %v135
    %137 = vdwg.mxu0
    %138 = vmatpush.msra.mxu0 0.0
    %139 = vmatpush.msra.mxu0 0.0
    %140 = vmatpush.msra.mxu0 0.0
    %141 = vmatpush.msra.mxu0 0.0
    %142 = vmatpush.msra.mxu0 0.0
    %143 = vmatpush.msra.mxu0 0.0
    %144 = vmatpush.msra.mxu0 0.0
    %145 = vmatpush.msra.mxu0 0.0
    %146 = vmatpush.msra.mxu0 0.0
    %147 = vmatpush.msra.mxu0 0.0
    %148 = vmatpush.msra.mxu0 0.0
    %149 = vmatpush.msra.mxu0 0.0
    %150 = vmatpush.msra.mxu0 0.0
    %151 = vmatpush.msra.mxu0 0.0
    %152 = vmatpush.msra.mxu0 0.0
    %153 = vmatpush.msra.mxu0 %v56
    %154 = vmatmul.f32.gmra.mxu0 %v116
    %v155 = vpop.f32.mrf.mxu0
    %v156 = vadd.f32 %v113, %v155
    %157 = vdwg.mxu0
    %v158 = vmul.f32 %v86, %v136
    %v159 = vmul.f32 %v106, %v156
    %v160 = vadd.f32 %v158, %v159
    %161 = vadd.xlane.f32.xlu0 %v160
    %v162 = vpop.xlane.xlu0 %161
    %v163 = vmul.f32 %v162, 0.00390625
    %v164 = vsub.f32 %v158, %v163
    %v165 = vsub.f32 %v159, %v163
    %v166 = vmul.f32 %v164, %v164
    %v167 = vmul.f32 %v165, %v165
    %v168 = vadd.f32 %v166, %v167
    %169 = vadd.xlane.f32.xlu0 %v168
    %v170 = vpop.xlane.xlu0 %169
    %v171 = vmul.f32 %v170, 0.003921569
    %v172 = vrsqrt.pop %v171
    %v173 = vmul.f32 %v172, %v171
    %v174 = vmul.f32 %v173, %v172
    %v175 = vmul.f32 0.5, %v174
    %v176 = vsub.f32 1.5, %v175
    %v177 = vmul.f32 %v172, %v176
    %v178 = vmul.f32 %v171, %v177
    %vm179 = vcmp.eq.f32.partialorder %v171, inf
    %v180 = vsel %vm179, %v171, %v178
    %vm181 = vcmp.eq.f32.partialorder %v171, 0.0
    %v182 = vand.u32 %v171, 2147483648
    %v183 = vsel %vm181, %v182, %v180
    %v184 = vadd.f32 %v183, 1e-05
    %v185 = vrcp.pop %v184
    %v186 = vmul.f32 %v184, %v185
    %v187 = vsub.f32 1.0, %v186
    %v188 = vmul.f32 %v185, %v187
    %v189 = vadd.f32 %v185, %v188
    %vm190 = vweird.f32 %v184
    %vm191 = vweird.f32 %v185
    %vm192 = vmor %vm190, %vm191
    %v193 = vsel %vm192, %v185, %v189
    %v194 = vand.u32 2147483647, %v184
    %vm195 = vcmp.eq.f32.partialorder %v194, 8.507059e+37
    %v196 = vand.u32 %v184, 2147483648
    %v197 = vor.u32 1.1754944e-38, %v196
    %v198 = vsel %vm195, %v197, %v193
    %v199 = vmul.f32 1.0, %v198
    %v200 = vmul.f32 %v164, %v199
    %v201 = vmul.f32 %v165, %v199
    %v202 = vmul.f32 %v200, 0.5
    %v203 = vmul.f32 %v201, 0.5
    %v204 = vmul.f32 %v200, 0.70710677
    %v205 = vmul.f32 %v201, 0.70710677
    %v206 = vmul.f32 %v204, %v204
    %v207 = vmin.f32 16.0, %v206
    %v208 = vmul.f32 %v207, 2.1237322e-06
    %v209 = vadd.f32 %v208, 0.00028619796
    %v210 = vmul.f32 %v207, %v209
    %v211 = vadd.f32 %v210, 0.0036580483
    %v212 = vmul.f32 %v207, %v211
    %v213 = vadd.f32 %v212, 0.05243302
    %v214 = vmul.f32 %v207, %v213
    %v215 = vadd.f32 %v214, 0.18741608
    %v216 = vmul.f32 %v207, %v215
    %v217 = vadd.f32 %v216, 1.1283791
    %v218 = vmul.f32 %v204, %v217
    %v219 = vmul.f32 %v207, 3.8918573e-05
    %v220 = vadd.f32 %v219, 0.001143296
    %v221 = vmul.f32 %v207, %v220
    %v222 = vadd.f32 %v221, 0.014752088
    %v223 = vmul.f32 %v207, %v222
    %v224 = vadd.f32 %v223, 0.112945676
    %v225 = vmul.f32 %v207, %v224
    %v226 = vadd.f32 %v225, 0.4994258
    %v227 = vmul.f32 %v207, %v226
    %v228 = vadd.f32 %v227, 1.0
    %v229 = vrcp.pop %v228
    %v230 = vmul.f32 %v228, %v229
    %v231 = vsub.f32 1.0, %v230
    %v232 = vmul.f32 %v229, %v231
    %v233 = vadd.f32 %v229, %v232
    %vm234 = vweird.f32 %v228
    %vm235 = vweird.f32 %v229
    %vm236 = vmor %vm234, %vm235
    %v237 = vsel %vm236, %v229, %v233
    %v238 = vand.u32 2147483647, %v228
    %vm239 = vcmp.eq.f32.partialorder %v238, 8.507059e+37
    %v240 = vand.u32 %v228, 2147483648
    %v241 = vor.u32 1.1754944e-38, %v240
    %v242 = vsel %vm239, %v241, %v237
    %v243 = vmul.f32 %v218, %v242
    %v244 = vmin.f32 %v243, 1.0
    %v245 = vmax.f32 %v244, -1.0
    %v246 = vmul.f32 %v205, %v205
    %v247 = vmin.f32 16.0, %v246
    %v248 = vmul.f32 %v247, 2.1237322e-06
    %v249 = vadd.f32 %v248, 0.00028619796
    %v250 = vmul.f32 %v247, %v249
    %v251 = vadd.f32 %v250, 0.0036580483
    %v252 = vmul.f32 %v247, %v251
    %v253 = vadd.f32 %v252, 0.05243302
    %v254 = vmul.f32 %v247, %v253
    %v255 = vadd.f32 %v254, 0.18741608
    %v256 = vmul.f32 %v247, %v255
    %v257 = vadd.f32 %v256, 1.1283791
    %v258 = vmul.f32 %v205, %v257
    %v259 = vmul.f32 %v247, 3.8918573e-05
    %v260 = vadd.f32 %v259, 0.001143296
    %v261 = vmul.f32 %v247, %v260
    %v262 = vadd.f32 %v261, 0.014752088
    %v263 = vmul.f32 %v247, %v262
    %v264 = vadd.f32 %v263, 0.112945676
    %v265 = vmul.f32 %v247, %v264
    %v266 = vadd.f32 %v265, 0.4994258
    %v267 = vmul.f32 %v247, %v266
    %v268 = vadd.f32 %v267, 1.0
    %v269 = vrcp.pop %v268
    %v270 = vmul.f32 %v268, %v269
    %v271 = vsub.f32 1.0, %v270
    %v272 = vmul.f32 %v269, %v271
    %v273 = vadd.f32 %v269, %v272
    %vm274 = vweird.f32 %v268
    %vm275 = vweird.f32 %v269
    %vm276 = vmor %vm274, %vm275
    %v277 = vsel %vm276, %v269, %v273
    %v278 = vand.u32 2147483647, %v268
    %vm279 = vcmp.eq.f32.partialorder %v278, 8.507059e+37
    %v280 = vand.u32 %v268, 2147483648
    %v281 = vor.u32 1.1754944e-38, %v280
    %v282 = vsel %vm279, %v281, %v277
    %v283 = vmul.f32 %v258, %v282
    %v284 = vmin.f32 %v283, 1.0
    %v285 = vmax.f32 %v284, -1.0
    %v286 = vadd.f32 %v245, 1.0
    %v287 = vadd.f32 %v285, 1.0
    %v288 = vmul.f32 %v202, %v286
    %v289 = vmul.f32 %v203, %v287
    %v290 = vld [vmem:[#allocation5] sm:$0xff]
    %v291 = vld [vmem:[%s6] sm:$0xff]
    %293 = vset.pattern.permute.xlu0 0
    %294 = vperm.xlu0 %293, %v291
    %v295 = vpop.permute.xlu0 %294
    %v298 = vsel %vm64, %v290, 0
    %300 = vmatpush.msra.mxu0 0.0
    %301 = vmatpush.msra.mxu0 0.0
    %302 = vmatpush.msra.mxu0 0.0
    %303 = vmatpush.msra.mxu0 0.0
    %304 = vmatpush.msra.mxu0 0.0
    %305 = vmatpush.msra.mxu0 0.0
    %306 = vmatpush.msra.mxu0 0.0
    %307 = vmatpush.msra.mxu0 0.0
    %308 = vmatpush.msra.mxu0 0.0
    %309 = vmatpush.msra.mxu0 0.0
    %310 = vmatpush.msra.mxu0 0.0
    %311 = vmatpush.msra.mxu0 0.0
    %312 = vmatpush.msra.mxu0 0.0
    %313 = vmatpush.msra.mxu0 0.0
    %314 = vmatpush.msra.mxu0 0.0
    %315 = vmatpush.msra.mxu0 %v288
    %316 = vmatmul.f32.gmra.mxu0 %v298
    %v317 = vpop.f32.mrf.mxu0
    %v318 = vadd.f32 %v295, %v317
    %319 = vdwg.mxu0
    %320 = vmatpush.msra.mxu0 0.0
    %321 = vmatpush.msra.mxu0 0.0
    %322 = vmatpush.msra.mxu0 0.0
    %323 = vmatpush.msra.mxu0 0.0
    %324 = vmatpush.msra.mxu0 0.0
    %325 = vmatpush.msra.mxu0 0.0
    %326 = vmatpush.msra.mxu0 0.0
    %327 = vmatpush.msra.mxu0 0.0
    %328 = vmatpush.msra.mxu0 0.0
    %329 = vmatpush.msra.mxu0 0.0
    %330 = vmatpush.msra.mxu0 0.0
    %331 = vmatpush.msra.mxu0 0.0
    %332 = vmatpush.msra.mxu0 0.0
    %333 = vmatpush.msra.mxu0 0.0
    %334 = vmatpush.msra.mxu0 0.0
    %335 = vmatpush.msra.mxu0 %v289
    %336 = vmatmul.f32.gmra.mxu0 %v298
    %v337 = vpop.f32.mrf.mxu0
    %v338 = vadd.f32 %v295, %v337
    %339 = vdwg.mxu0
    %340 = vst [vmem:[#allocation7] sm:$0xff] %v318
    %341 = vst [vmem:[#allocation7 + $0x8] sm:$0xff] %v338
    // Predicated region
    $region38: #{tpu_custom_call.1} parent=1 // pred_check
      _
    $region39: #{tpu_custom_call.1} parent=1 // pred_check_branch
      %343 = sbr.rel (0) target = $region41
    $region40: #{tpu_custom_call.1} parent=1 // pred_region
      %345 = vsyncadd [#allocation4], 0
      %s347 = sshll.u32 [#allocation7], 4
      %s348 = int_to_ptr.vmem [resolvable:$true] %s347
      %s349 = sshll.u32 %s7, 4
      %s350 = int_to_ptr.hbm [resolvable:$true] %s349
      %352 = dma.vmem_to_hbm [thread:$0]  %s348, 256, %s350, [#allocation4]
    $region41: #{tpu_custom_call.1} parent=1 // pred_fallthru
      _
    // Predicated region
    $region42: #{tpu_custom_call.1} parent=1 // pred_check
      _
    $region43: #{tpu_custom_call.1} parent=1 // pred_check_branch
      %354 = sbr.rel (0) target = $region45
    $region44: #{tpu_custom_call.1} parent=1 // pred_region
      %356 = dma.done [#allocation4], 256
    $region45: #{tpu_custom_call.1} parent=1 // pred_fallthru
      _
    %357 = vsyncpa [#allocation3], 1
    %358 = vsyncpa [#allocation6], 1
    %359 = vsyncpa [#allocation4], 1

</llo_original>
